<compile_context>
chip_gen: v6e
topology: v6e:2x2x1
jax: 0.10.0
libtpu: 0.0.40
codegen_flags: <defaults>
</compile_context>

<pallas_src>
import functools

import jax
import jax.numpy as jnp
from jax import lax
from jax.experimental import pallas as pl
from jax.experimental.pallas import tpu as pltpu

_NEG_BIG = -1e30


def _round_up(x, m):
    return ((x + m - 1) // m) * m


def _mil_fc_mc_kernel(h_ref, w1_ref, b1_ref, w2_ref, b2_ref, out_ref,
                      best_logits_ref, best_score_ref,
                      *, n_rows, tile_n, c_pad):
    i = pl.program_id(0)

    # ---- (re)initialize the carry on the first tile ----
    @pl.when(i == 0)
    def _():
        best_score_ref[...] = jnp.full((1, c_pad), jnp.inf, jnp.float32)
        best_logits_ref[...] = jnp.zeros((1, c_pad), jnp.float32)

    # ---- fc: Linear(D0, D1) + ReLU (bf16 MXU operands, f32 accumulation).
    # h tile is cast in-kernel -> no separate host pad/cast pass over h.
    hidden = jnp.dot(h_ref[...].astype(jnp.bfloat16), w1_ref[...],
                     preferred_element_type=jnp.float32)
    hidden = jnp.maximum(hidden + b1_ref[...], 0.0)              # (TN, D1) f32

    # ---- fused per-class heads -> (TN, C_pad); padded cols carry -1e30 bias
    logits = jnp.dot(hidden.astype(jnp.bfloat16), w2_ref[...],
                     preferred_element_type=jnp.float32) + b2_ref[...]

    # Rows past n_rows belong to the ragged tail block and hold unspecified
    # data; zero them so no NaN/inf can reach the reductions or the one-hot
    # MXU select below.
    local_iota = lax.broadcasted_iota(jnp.int32, (tile_n, 1), 0)
    valid = (i * tile_n + local_iota) < n_rows                   # (TN, 1)
    logits = jnp.where(valid, logits, 0.0)

    # per-row peak softmax prob = 1/sum_exp  =>  argmax row == argmin sum_exp
    row_max = jnp.max(logits, axis=1, keepdims=True)
    sum_exp = jnp.sum(jnp.exp(logits - row_max), axis=1, keepdims=True)
    sum_exp = jnp.where(valid, sum_exp, jnp.inf)                 # mask tail rows

    # first (lowest-index) row in this tile achieving the tile minimum
    tile_min = jnp.min(sum_exp)
    best_local = jnp.min(jnp.where(sum_exp == tile_min, local_iota, tile_n))

    # winner-row extraction as a one-hot (1,TN) x (TN,C_pad) f32 dot on the MXU
    # (replaces masked select + cross-sublane reduce on VPU/XLU).
    onehot = (lax.broadcasted_iota(jnp.int32, (1, tile_n), 1)
              == best_local).astype(jnp.float32)
    tile_best = jnp.dot(onehot, logits, preferred_element_type=jnp.float32)

    # ---- online carry update (strict '<' => earlier tiles win exact ties) ----
    cur = best_score_ref[...]
    better = tile_min < cur                                      # (1, C_pad)
    best_score_ref[...] = jnp.where(better, tile_min, cur)
    best_logits_ref[...] = jnp.where(better, tile_best, best_logits_ref[...])

    # ---- finalize on the last tile ----
    @pl.when(i == pl.num_programs(0) - 1)
    def _():
        out_ref[...] = best_logits_ref[...]


def mil_fc_mc_forward(h, w1, b1, w2, b2, *, block_n=2048):
    """h: (N, D0) f32. Weights pre-transposed: w1 (D0, D1), w2 (D1, C).

    Returns top_instance of shape (1, C) == logits[argmax row], matching the
    PyTorch module's forward (results_dict is empty and handled by the caller).
    """
    if h.ndim == 3:                  # mirror torch's h.squeeze() for (1, N, D0)
        h = jnp.squeeze(h, axis=0)
    n, d0 = h.shape
    d1 = w1.shape[1]
    c = w2.shape[1]
    c_pad = _round_up(max(c, 128), 128)        # lane-dense head / output

    # ---- byte-budgeted tiling over N -----------------------------------
    # h stays f32 in HBM (cast in-kernel); cap each pipeline buffer at ~8 MiB
    # so 2 buffers + resident weights fit every generation's scoped VMEM.
    bytes_per_row = d0 * 4
    budget_rows = max(64, (8 * 1024 * 1024) // bytes_per_row)
    tile_n = min(block_n, budget_rows)
    if tile_n >= 256:
        tile_n = (tile_n // 256) * 256          # full MXU LHS passes (v6e/v7x)
    tile_n = min(tile_n, _round_up(n, 8))       # single tile for small bags
    tile_n = max(8, _round_up(tile_n, 8))
    num_tiles = pl.cdiv(n, tile_n)

    # ---- small host-side prep (weights only; h is untouched) -----------
    w1_b = w1.astype(jnp.bfloat16)
    b1_f = b1.reshape(1, d1).astype(jnp.float32)
    w2_p = jnp.zeros((d1, c_pad), jnp.bfloat16).at[:, :c].set(
        w2.astype(jnp.bfloat16))
    b2_p = jnp.full((1, c_pad), _NEG_BIG, jnp.float32).at[:, :c].set(
        b2.reshape(1, c).astype(jnp.float32))

    # ---- VMEM budget: double-buffered h tile + (conservatively x2) weights
    vmem_need = (2 * tile_n * d0 * 4
                 + 2 * (d0 * d1 * 2 + d1 * 4 + d1 * c_pad * 2 + c_pad * 4)
                 + 6 * c_pad * 4)
    vmem_limit = int(min(max(int(vmem_need * 1.5), 32 * 1024 * 1024),
                         64 * 1024 * 1024))

    kernel = functools.partial(_mil_fc_mc_kernel, n_rows=n, tile_n=tile_n,
                               c_pad=c_pad)

    grid_spec = pltpu.PrefetchScalarGridSpec(
        num_scalar_prefetch=0,
        grid=(num_tiles,),
        in_specs=[
            pl.BlockSpec((tile_n, d0), lambda i: (i, 0)),        # streamed h
            pl.BlockSpec((d0, d1), lambda i: (0, 0)),            # resident w1
            pl.BlockSpec((1, d1), lambda i: (0, 0)),             # resident b1
            pl.BlockSpec((d1, c_pad), lambda i: (0, 0)),         # resident w2
            pl.BlockSpec((1, c_pad), lambda i: (0, 0)),          # resident b2
        ],
        out_specs=pl.BlockSpec((1, c_pad), lambda i: (0, 0)),
        scratch_shapes=[
            pltpu.VMEM((1, c_pad), jnp.float32),   # best-row logits carry
            pltpu.VMEM((1, c_pad), jnp.float32),   # running min(sum_exp) carry
        ],
    )

    out = pl.pallas_call(
        kernel,
        out_shape=jax.ShapeDtypeStruct((1, c_pad), jnp.float32),
        grid_spec=grid_spec,
        compiler_params=pltpu.CompilerParams(
            dimension_semantics=("arbitrary",),
            vmem_limit_bytes=vmem_limit),
    )(h, w1_b, b1_f, w2_p, b2_p)

    return out[:, :c]


if __name__ == "__main__":
    # small shapes consistent with the module: size=[256, 128], n_classes=4 (>2)
    N, D0, D1, C = 37, 256, 128, 4
    key = jax.random.PRNGKey(0)
    kh, k1, k2 = jax.random.split(key, 3)
    h = jax.random.normal(kh, (N, D0), jnp.float32)
    w1 = jax.random.normal(k1, (D0, D1), jnp.float32) * jnp.sqrt(2.0 / (D0 + D1))
    b1 = jnp.zeros((1, D1), jnp.float32)
    w2 = jax.random.normal(k2, (D1, C), jnp.float32) * jnp.sqrt(2.0 / (D1 + 1))
    b2 = jnp.zeros((1, C), jnp.float32)

    # pure-JAX reference with the same bf16-operand / f32-accumulate math
    hid = jnp.maximum(
        jnp.dot(h.astype(jnp.bfloat16), w1.astype(jnp.bfloat16),
                preferred_element_type=jnp.float32) + b1, 0.0)
    logits = jnp.dot(hid.astype(jnp.bfloat16), w2.astype(jnp.bfloat16),
                     preferred_element_type=jnp.float32) + b2
    y_probs = jax.nn.softmax(logits, axis=1)
    m = jnp.argmax(y_probs.reshape(-1))
    ref = logits[m // C][None, :]

    # small block_n to exercise multiple tiles, the carry, and a ragged tail
    top_small = mil_fc_mc_forward(h, w1, b1, w2, b2, block_n=16)
    # default (single-tile) path
    top_big = mil_fc_mc_forward(h, w1, b1, w2, b2)
    jax.block_until_ready((top_small, top_big))

    assert top_small.shape == (1, C) and top_big.shape == (1, C)
    assert jnp.allclose(top_small, ref, atol=1e-2, rtol=1e-2), (top_small, ref)
    assert jnp.allclose(top_big, ref, atol=1e-2, rtol=1e-2), (top_big, ref)
    print("KERNEL_OK")
</pallas_src>

<mosaic_0001>
module attributes {stable_mosaic.version = 11 : i64} {
  func.func @_mil_fc_mc_kernel(%arg0: i32, %arg1: memref<16x256xf32, #tpu.memory_space<vmem>>, %arg2: memref<256x128xbf16, #tpu.memory_space<vmem>>, %arg3: memref<1x128xf32, #tpu.memory_space<vmem>>, %arg4: memref<128x128xbf16, #tpu.memory_space<vmem>>, %arg5: memref<1x128xf32, #tpu.memory_space<vmem>>, %arg6: memref<1x128xf32, #tpu.memory_space<vmem>>, %arg7: memref<1x128xf32, #tpu.memory_space<vmem>>, %arg8: memref<1x128xf32, #tpu.memory_space<vmem>>) attributes {dimension_semantics = [#tpu.dimension_semantics<arbitrary>], iteration_bounds = array<i64: 3>, scalar_prefetch = 0 : i64, scratch_operands = 2 : i64, tpu.core_type = #tpu.core_type<tc>, window_params = [{transform_indices = @transform_0, window_bounds = array<i64: 16, 256>}, {pipeline_mode = #tpu.pipeline_mode<synchronous>, transform_indices = @transform_1, window_bounds = array<i64: 256, 128>}, {pipeline_mode = #tpu.pipeline_mode<synchronous>, transform_indices = @transform_2, window_bounds = array<i64: 1, 128>}, {pipeline_mode = #tpu.pipeline_mode<synchronous>, transform_indices = @transform_3, window_bounds = array<i64: 128, 128>}, {pipeline_mode = #tpu.pipeline_mode<synchronous>, transform_indices = @transform_4, window_bounds = array<i64: 1, 128>}, {pipeline_mode = #tpu.pipeline_mode<synchronous>, transform_indices = @transform_5, window_bounds = array<i64: 1, 128>}]} {
    %c0_i32 = arith.constant 0 : i32
    %0 = arith.cmpi eq, %arg0, %c0_i32 : i32
    %1 = arith.extui %0 : i1 to i32
    %c0_i32_0 = arith.constant 0 : i32
    %2 = arith.cmpi ne, %1, %c0_i32_0 : i32
    scf.if %2 {
      %cst_29 = arith.constant 0x7F800000 : f32
      %67 = vector.broadcast %cst_29 : f32 to vector<1x128xf32>
      %c0_30 = arith.constant 0 : index
      %c0_31 = arith.constant 0 : index
      %68 = vector.load %arg8[%c0_30, %c0_31] : memref<1x128xf32, #tpu.memory_space<vmem>>, vector<1x128xf32>
      tpu.vector_store %arg8[%c0_30, %c0_31], %67 {strides = array<i32>} : memref<1x128xf32, #tpu.memory_space<vmem>>, vector<1x128xf32>,
      %cst_32 = arith.constant 0.000000e+00 : f32
      %69 = vector.broadcast %cst_32 : f32 to vector<1x128xf32>
      %c0_33 = arith.constant 0 : index
      %c0_34 = arith.constant 0 : index
      %70 = vector.load %arg7[%c0_33, %c0_34] : memref<1x128xf32, #tpu.memory_space<vmem>>, vector<1x128xf32>
      tpu.vector_store %arg7[%c0_33, %c0_34], %69 {strides = array<i32>} : memref<1x128xf32, #tpu.memory_space<vmem>>, vector<1x128xf32>,
    } else {
    }
    %c0 = arith.constant 0 : index
    %c0_1 = arith.constant 0 : index
    %3 = vector.load %arg1[%c0, %c0_1] : memref<16x256xf32, #tpu.memory_space<vmem>>, vector<16x256xf32>
    %4 = arith.truncf %3 : vector<16x256xf32> to vector<16x256xbf16>
    %c0_2 = arith.constant 0 : index
    %c0_3 = arith.constant 0 : index
    %5 = vector.load %arg2[%c0_2, %c0_3] : memref<256x128xbf16, #tpu.memory_space<vmem>>, vector<256x128xbf16>
    %cst = arith.constant dense<0.000000e+00> : vector<16x128xf32>
    %6 = tpu.matmul %4, %5, %cst {dimension_numbers = #tpu.dot_dimension_numbers<[1], [0], [0], [1], [0, 0, 1, 1], [], []>} : vector<16x256xbf16>, vector<256x128xbf16>, vector<16x128xf32> -> vector<16x128xf32>
    %c0_4 = arith.constant 0 : index
    %c0_5 = arith.constant 0 : index
    %7 = vector.load %arg3[%c0_4, %c0_5] : memref<1x128xf32, #tpu.memory_space<vmem>>, vector<1x128xf32>
    %8 = vector.broadcast %7 : vector<1x128xf32> to vector<16x128xf32>
    %9 = arith.addf %6, %8 : vector<16x128xf32>
    %cst_6 = arith.constant 0.000000e+00 : f32
    %10 = vector.broadcast %cst_6 : f32 to vector<16x128xf32>
    %11 = arith.maximumf %9, %10 : vector<16x128xf32>
    %12 = arith.truncf %11 : vector<16x128xf32> to vector<16x128xbf16>
    %c0_7 = arith.constant 0 : index
    %c0_8 = arith.constant 0 : index
    %13 = vector.load %arg4[%c0_7, %c0_8] : memref<128x128xbf16, #tpu.memory_space<vmem>>, vector<128x128xbf16>
    %cst_9 = arith.constant dense<0.000000e+00> : vector<16x128xf32>
    %14 = tpu.matmul %12, %13, %cst_9 {dimension_numbers = #tpu.dot_dimension_numbers<[1], [0], [0], [1], [0, 0, 1, 1], [], []>} : vector<16x128xbf16>, vector<128x128xbf16>, vector<16x128xf32> -> vector<16x128xf32>
    %c0_10 = arith.constant 0 : index
    %c0_11 = arith.constant 0 : index
    %15 = vector.load %arg5[%c0_10, %c0_11] : memref<1x128xf32, #tpu.memory_space<vmem>>, vector<1x128xf32>
    %16 = vector.broadcast %15 : vector<1x128xf32> to vector<16x128xf32>
    %17 = arith.addf %14, %16 : vector<16x128xf32>
    %18 = tpu.iota {dimensions = array<i32: 0>} : vector<16x1xi32>
    %c16_i32 = arith.constant 16 : i32
    %19 = arith.muli %arg0, %c16_i32 : i32
    %20 = vector.broadcast %19 : i32 to vector<16x1xi32>
    %21 = arith.addi %20, %18 : vector<16x1xi32>
    %c37_i32 = arith.constant 37 : i32
    %22 = vector.broadcast %c37_i32 : i32 to vector<16x1xi32>
    %23 = arith.cmpi slt, %21, %22 : vector<16x1xi32>
    %cst_12 = arith.constant 0.000000e+00 : f32
    %24 = vector.shape_cast %23 : vector<16x1xi1> to vector<16x1xi1>
    %25 = vector.broadcast %24 : vector<16x1xi1> to vector<16x128xi1>
    %26 = vector.broadcast %cst_12 : f32 to vector<16x128xf32>
    %27 = arith.select %25, %17, %26 : vector<16x128xi1>, vector<16x128xf32>
    %cst_13 = arith.constant dense<0xFF800000> : vector<16xf32>
    %28 = vector.multi_reduction <maximumf>, %27, %cst_13 [1] : vector<16x128xf32> to vector<16xf32>
    %29 = vector.shape_cast %28 : vector<16xf32> to vector<16x1xf32>
    %30 = vector.broadcast %29 : vector<16x1xf32> to vector<16x128xf32>
    %31 = arith.subf %27, %30 : vector<16x128xf32>
    %32 = math.exp %31 : vector<16x128xf32>
    %cst_14 = arith.constant dense<0.000000e+00> : vector<16xf32>
    %33 = vector.multi_reduction <add>, %32, %cst_14 [1] : vector<16x128xf32> to vector<16xf32>
    %34 = vector.shape_cast %33 : vector<16xf32> to vector<16x1xf32>
    %cst_15 = arith.constant 0x7F800000 : f32
    %35 = vector.broadcast %cst_15 : f32 to vector<16x1xf32>
    %36 = arith.select %23, %34, %35 : vector<16x1xi1>, vector<16x1xf32>
    %37 = vector.shape_cast %36 : vector<16x1xf32> to vector<1x16x1xf32>
    %cst_16 = arith.constant dense<0x7F800000> : vector<1xf32>
    %38 = vector.multi_reduction <minimumf>, %37, %cst_16 [1, 2] : vector<1x16x1xf32> to vector<1xf32>
    %39 = vector.shape_cast %38 : vector<1xf32> to vector<1x1x1xf32>
    %40 = vector.extract %39[0, 0, 0] : f32 from vector<1x1x1xf32>
    %41 = vector.broadcast %40 : f32 to vector<16x1xf32>
    %42 = arith.cmpf oeq, %36, %41 : vector<16x1xf32>
    %c16_i32_17 = arith.constant 16 : i32
    %43 = vector.broadcast %c16_i32_17 : i32 to vector<16x1xi32>
    %44 = arith.select %42, %18, %43 : vector<16x1xi1>, vector<16x1xi32>
    %45 = vector.shape_cast %44 : vector<16x1xi32> to vector<1x16x1xi32>
    %cst_18 = arith.constant dense<2147483647> : vector<1xi32>
    %46 = vector.multi_reduction <minsi>, %45, %cst_18 [1, 2] : vector<1x16x1xi32> to vector<1xi32>
    %47 = vector.shape_cast %46 : vector<1xi32> to vector<1x1x1xi32>
    %48 = vector.extract %47[0, 0, 0] : i32 from vector<1x1x1xi32>
    %49 = tpu.iota {dimensions = array<i32: 1>} : vector<1x16xi32>
    %50 = vector.broadcast %48 : i32 to vector<1x16xi32>
    %51 = arith.cmpi eq, %49, %50 : vector<1x16xi32>
    %52 = arith.extui %51 : vector<1x16xi1> to vector<1x16xi32>
    %53 = arith.sitofp %52 : vector<1x16xi32> to vector<1x16xf32>
    %cst_19 = arith.constant dense<0.000000e+00> : vector<1x128xf32>
    %54 = tpu.matmul %53, %27, %cst_19 {dimension_numbers = #tpu.dot_dimension_numbers<[1], [0], [0], [1], [0, 0, 1, 1], [], []>} : vector<1x16xf32>, vector<16x128xf32>, vector<1x128xf32> -> vector<1x128xf32>
    %c0_20 = arith.constant 0 : index
    %c0_21 = arith.constant 0 : index
    %55 = vector.load %arg8[%c0_20, %c0_21] : memref<1x128xf32, #tpu.memory_space<vmem>>, vector<1x128xf32>
    %56 = vector.broadcast %40 : f32 to vector<1x128xf32>
    %57 = arith.cmpf olt, %56, %55 : vector<1x128xf32>
    %58 = vector.broadcast %40 : f32 to vector<1x128xf32>
    %59 = arith.select %57, %58, %55 : vector<1x128xi1>, vector<1x128xf32>
    %c0_22 = arith.constant 0 : index
    %c0_23 = arith.constant 0 : index
    %60 = vector.load %arg8[%c0_22, %c0_23] : memref<1x128xf32, #tpu.memory_space<vmem>>, vector<1x128xf32>
    tpu.vector_store %arg8[%c0_22, %c0_23], %59 {strides = array<i32>} : memref<1x128xf32, #tpu.memory_space<vmem>>, vector<1x128xf32>,
    %c0_24 = arith.constant 0 : index
    %c0_25 = arith.constant 0 : index
    %61 = vector.load %arg7[%c0_24, %c0_25] : memref<1x128xf32, #tpu.memory_space<vmem>>, vector<1x128xf32>
    %62 = arith.select %57, %54, %61 : vector<1x128xi1>, vector<1x128xf32>
    %c0_26 = arith.constant 0 : index
    %c0_27 = arith.constant 0 : index
    %63 = vector.load %arg7[%c0_26, %c0_27] : memref<1x128xf32, #tpu.memory_space<vmem>>, vector<1x128xf32>
    tpu.vector_store %arg7[%c0_26, %c0_27], %62 {strides = array<i32>} : memref<1x128xf32, #tpu.memory_space<vmem>>, vector<1x128xf32>,
    %c2_i32 = arith.constant 2 : i32
    %64 = arith.cmpi eq, %arg0, %c2_i32 : i32
    %65 = arith.extui %64 : i1 to i32
    %c0_i32_28 = arith.constant 0 : i32
    %66 = arith.cmpi ne, %65, %c0_i32_28 : i32
    scf.if %66 {
      %c0_29 = arith.constant 0 : index
      %c0_30 = arith.constant 0 : index
      %67 = vector.load %arg7[%c0_29, %c0_30] : memref<1x128xf32, #tpu.memory_space<vmem>>, vector<1x128xf32>
      %c0_31 = arith.constant 0 : index
      %c0_32 = arith.constant 0 : index
      %68 = vector.load %arg6[%c0_31, %c0_32] : memref<1x128xf32, #tpu.memory_space<vmem>>, vector<1x128xf32>
      tpu.vector_store %arg6[%c0_31, %c0_32], %67 {strides = array<i32>} : memref<1x128xf32, #tpu.memory_space<vmem>>, vector<1x128xf32>,
    } else {
    }
    return
  }
  func.func @transform_0(%arg0: i32) -> (i32, i32) {
    %c0_i32 = arith.constant 0 : i32
    %c0_i32_0 = arith.constant 0 : i32
    return %arg0, %c0_i32 : i32, i32
  }
  func.func @transform_1(%arg0: i32) -> (i32, i32) {
    %c0_i32 = arith.constant 0 : i32
    %c0_i32_0 = arith.constant 0 : i32
    %c0_i32_1 = arith.constant 0 : i32
    return %c0_i32, %c0_i32_0 : i32, i32
  }
  func.func @transform_2(%arg0: i32) -> (i32, i32) {
    %c0_i32 = arith.constant 0 : i32
    %c0_i32_0 = arith.constant 0 : i32
    %c0_i32_1 = arith.constant 0 : i32
    return %c0_i32, %c0_i32_0 : i32, i32
  }
  func.func @transform_3(%arg0: i32) -> (i32, i32) {
    %c0_i32 = arith.constant 0 : i32
    %c0_i32_0 = arith.constant 0 : i32
    %c0_i32_1 = arith.constant 0 : i32
    return %c0_i32, %c0_i32_0 : i32, i32
  }
  func.func @transform_4(%arg0: i32) -> (i32, i32) {
    %c0_i32 = arith.constant 0 : i32
    %c0_i32_0 = arith.constant 0 : i32
    %c0_i32_1 = arith.constant 0 : i32
    return %c0_i32, %c0_i32_0 : i32, i32
  }
  func.func @transform_5(%arg0: i32) -> (i32, i32) {
    %c0_i32 = arith.constant 0 : i32
    %c0_i32_0 = arith.constant 0 : i32
    %c0_i32_1 = arith.constant 0 : i32
    return %c0_i32, %c0_i32_0 : i32, i32
  }
}

</mosaic_0001>

<llo_original>
// kernel: tpu_custom_call.1
$region0: #{tpu_custom_call.1}
  #allocation0 [shape = 'u32[]', space=smem, size = 0x4, offset = 0x4, fixed_abs, tag = 'smem constant byte address 0x4 - core index']
  #allocation1 [shape = 'u32[144,128]{1,0:T(1,128)}', space=vmem, size = 0x12000, scoped, tag = 'internal scratch']
  #allocation2 [shape = 'f32[1,128]{1,0:T(1,128)}', space=vmem, size = 0x200, scoped, tag = 'scratch operand']
  #allocation3 [shape = 'f32[1,128]{1,0:T(1,128)}', space=vmem, size = 0x200, scoped, tag = 'scratch operand']
  %s0 = inlined_call_operand.hbm [shape: f32[37,256], index: 0, kind: input, shape index: {}]
  %s1 = inlined_call_operand.hbm [shape: bf16[256,128], index: 1, kind: input, shape index: {}]
  %s2 = inlined_call_operand.vmem [shape: f32[1,128], index: 2, kind: input, shape index: {}]
  %s3 = inlined_call_operand.hbm [shape: bf16[128,128], index: 3, kind: input, shape index: {}]
  %s4 = inlined_call_operand.vmem [shape: f32[1,128], index: 4, kind: input, shape index: {}]
  %s5 = inlined_call_operand.hbm [shape: f32[1,128], index: 5, kind: output, shape index: {}]
  %s6 = sld [smem:[#allocation0]]
  $region73: #{tpu_custom_call.1} parent=0
    _
  %s8 = ssub.s32 1, %s6
  %s9 = scalar_select 0, %s8, %s6
  $region1: #{tpu_custom_call.1} parent=0
    #allocation4 [shape = 'u8[32768]{0}', space=vmem, size = 0x8000, scoped, tag = 'input window, operand 0']
    #allocation5 [shape = 's32[2]{0}', space=sflag, size = 0x8, scoped, tag = 'scoped memory for tpu_custom_call.1']
    #allocation6 [shape = 's32[2]{0}', space=sflag, size = 0x8, scoped, tag = 'scoped memory for tpu_custom_call.1']
    #allocation7 [shape = 'u8[65536]{0}', space=vmem, size = 0x10000, scoped, tag = 'input window, operand 1, single buffered']
    #allocation8 [shape = 's32[1]{0}', space=sflag, size = 0x4, scoped, tag = 'scoped memory for tpu_custom_call.1']
    #allocation9 [shape = 'u8[32768]{0}', space=vmem, size = 0x8000, scoped, tag = 'input window, operand 3, single buffered']
    #allocation10 [shape = 'u8[512]{0}', space=vmem, size = 0x400, scoped, tag = 'output window, operand 0, single buffered']
    %10 = vsyncpa [#allocation5], 0
    %s11 = scalar_lea.sflag [#allocation5], 1
    %12 = vsyncpa %s11, 0
    %13 = vsyncpa [#allocation8], 0
    %14 = vsyncpa [#allocation6], 0
    loop: start=0, step=1, limit=5
    $region2: #{tpu_custom_call.1} parent=1 // loop_pre_header
      _
    $region3: #{tpu_custom_call.1} parent=1 // loop_header
      %s16 = sphi 0, %s20
      %p17 = scmp.ge.s32.totalorder %s16, 5
      %s26 = sphi 0, %s28
      %s29 = sphi 0, %s26
      %s30 = sphi 0, %s29
      %s46 = sphi 0, %s30
      %s50 = sphi 0, %s50
      %s52 = sphi 0, %s50
      %s53 = sphi 0, %s52
      %s67 = sphi 0, %s53
      %s71 = sphi 0, %s71
      %s73 = sphi 0, %s71
      %s74 = sphi 0, %s73
      %s88 = sphi 0, %s74
      %s92 = sphi 0, %s92
      %s94 = sphi 0, %s92
      %s95 = sphi 0, %s94
      %s109 = sphi 0, %s95
      %s113 = sphi 0, %s113
      %s115 = sphi 0, %s113
      %s116 = sphi 0, %s115
      %s130 = sphi 0, %s116
      %s134 = sphi 0, %s134
      %s136 = sphi 0, %s134
      %s137 = sphi 0, %s136
      %s151 = sphi 0, %s137
    $region4: #{tpu_custom_call.1} parent=1 // loop_header_branch
      %19 = sbr.rel (%p17) target = $region8
    $region5: #{tpu_custom_call.1} parent=1 // loop_body
      %s21 = ssub.s32 %s16, 1
      %s22 = ssub.s32 %s16, 2
      %s23 = sadd.s32 %s16, 1
      %s24 = ssub.s32 %s16, %s23
      %p25 = scmp.eq.s32.totalorder %s24, 0
      %s27 = sadd.s32 %s26, 1
      %s28 = scalar_select %p25, %s26, %s27
      %p31 = pneg %p25
      %p32 = scmp.eq.s32.totalorder %s16, 2
      %p33 = por %p31, %p32
      %p34 = scmp.ne.s32.totalorder %s26, %s29
      %p35 = scmp.eq.s32.totalorder %s16, 0
      %p36 = por %p34, %p35
      %p37 = scmp.ne.s32.totalorder %s26, %s29
      %p38 = scmp.eq.s32.totalorder %s21, 2
      %p39 = por %p37, %p38
      %p40 = scmp.ne.s32.totalorder %s29, %s30
      %p41 = scmp.eq.s32.totalorder %s21, 0
      %p42 = por %p40, %p41
      %p43 = scmp.ne.s32.totalorder %s29, %s30
      %p44 = scmp.eq.s32.totalorder %s22, 2
      %p45 = por %p43, %p44
      %p47 = scmp.ne.s32.totalorder %s30, %s46
      %p48 = scmp.eq.s32.totalorder %s22, 0
      %p49 = por %p47, %p48
      %s51 = sadd.s32 %s50, 1
      %p54 = scmp.eq.s32.totalorder %s16, 2
      %p55 = scmp.ne.s32.totalorder %s50, %s52
      %p56 = scmp.eq.s32.totalorder %s16, 0
      %p57 = por %p55, %p56
      %p58 = scmp.ne.s32.totalorder %s50, %s52
      %p59 = scmp.eq.s32.totalorder %s21, 2
      %p60 = por %p58, %p59
      %p61 = scmp.ne.s32.totalorder %s52, %s53
      %p62 = scmp.eq.s32.totalorder %s21, 0
      %p63 = por %p61, %p62
      %p64 = scmp.ne.s32.totalorder %s52, %s53
      %p65 = scmp.eq.s32.totalorder %s22, 2
      %p66 = por %p64, %p65
      %p68 = scmp.ne.s32.totalorder %s53, %s67
      %p69 = scmp.eq.s32.totalorder %s22, 0
      %p70 = por %p68, %p69
      %s72 = sadd.s32 %s71, 1
      %p75 = scmp.eq.s32.totalorder %s16, 2
      %p76 = scmp.ne.s32.totalorder %s71, %s73
      %p77 = scmp.eq.s32.totalorder %s16, 0
      %p78 = por %p76, %p77
      %p79 = scmp.ne.s32.totalorder %s71, %s73
      %p80 = scmp.eq.s32.totalorder %s21, 2
      %p81 = por %p79, %p80
      %p82 = scmp.ne.s32.totalorder %s73, %s74
      %p83 = scmp.eq.s32.totalorder %s21, 0
      %p84 = por %p82, %p83
      %p85 = scmp.ne.s32.totalorder %s73, %s74
      %p86 = scmp.eq.s32.totalorder %s22, 2
      %p87 = por %p85, %p86
      %p89 = scmp.ne.s32.totalorder %s74, %s88
      %p90 = scmp.eq.s32.totalorder %s22, 0
      %p91 = por %p89, %p90
      %s93 = sadd.s32 %s92, 1
      %p96 = scmp.eq.s32.totalorder %s16, 2
      %p97 = scmp.ne.s32.totalorder %s92, %s94
      %p98 = scmp.eq.s32.totalorder %s16, 0
      %p99 = por %p97, %p98
      %p100 = scmp.ne.s32.totalorder %s92, %s94
      %p101 = scmp.eq.s32.totalorder %s21, 2
      %p102 = por %p100, %p101
      %p103 = scmp.ne.s32.totalorder %s94, %s95
      %p104 = scmp.eq.s32.totalorder %s21, 0
      %p105 = por %p103, %p104
      %p106 = scmp.ne.s32.totalorder %s94, %s95
      %p107 = scmp.eq.s32.totalorder %s22, 2
      %p108 = por %p106, %p107
      %p110 = scmp.ne.s32.totalorder %s95, %s109
      %p111 = scmp.eq.s32.totalorder %s22, 0
      %p112 = por %p110, %p111
      %s114 = sadd.s32 %s113, 1
      %p117 = scmp.eq.s32.totalorder %s16, 2
      %p118 = scmp.ne.s32.totalorder %s113, %s115
      %p119 = scmp.eq.s32.totalorder %s16, 0
      %p120 = por %p118, %p119
      %p121 = scmp.ne.s32.totalorder %s113, %s115
      %p122 = scmp.eq.s32.totalorder %s21, 2
      %p123 = por %p121, %p122
      %p124 = scmp.ne.s32.totalorder %s115, %s116
      %p125 = scmp.eq.s32.totalorder %s21, 0
      %p126 = por %p124, %p125
      %p127 = scmp.ne.s32.totalorder %s115, %s116
      %p128 = scmp.eq.s32.totalorder %s22, 2
      %p129 = por %p127, %p128
      %p131 = scmp.ne.s32.totalorder %s116, %s130
      %p132 = scmp.eq.s32.totalorder %s22, 0
      %p133 = por %p131, %p132
      %s135 = sadd.s32 %s134, 1
      %p138 = scmp.eq.s32.totalorder %s16, 2
      %p139 = scmp.ne.s32.totalorder %s134, %s136
      %p140 = scmp.eq.s32.totalorder %s16, 0
      %p141 = por %p139, %p140
      %p142 = scmp.ne.s32.totalorder %s134, %s136
      %p143 = scmp.eq.s32.totalorder %s21, 2
      %p144 = por %p142, %p143
      %p145 = scmp.ne.s32.totalorder %s136, %s137
      %p146 = scmp.eq.s32.totalorder %s21, 0
      %p147 = por %p145, %p146
      %p148 = scmp.ne.s32.totalorder %s136, %s137
      %p149 = scmp.eq.s32.totalorder %s22, 2
      %p150 = por %p148, %p149
      %p152 = scmp.ne.s32.totalorder %s137, %s151
      %p153 = scmp.eq.s32.totalorder %s22, 0
      %p154 = por %p152, %p153
      %p155 = scmp.le.s32.totalorder 1, %s16
      %p156 = scmp.lt.s32.totalorder %s16, 4
      %p157 = pnand %p155, %p156
      %p158 = pneg %p157
      // Predicated region
      $region9: #{tpu_custom_call.1} parent=5 // pred_check
        _
      $region10: #{tpu_custom_call.1} parent=5 // pred_check_branch
        %160 = sbr.rel (%p157) target = $region12
      $region11: #{tpu_custom_call.1} parent=5 // pred_region
        %s161 = ssub.s32 %s16, 1
        // Predicated region
        $region13: #{tpu_custom_call.1} parent=11 // pred_check
          %p162 = pneg %p63
        $region14: #{tpu_custom_call.1} parent=11 // pred_check_branch
          %164 = sbr.rel (%p162) target = $region16
        $region15: #{tpu_custom_call.1} parent=11 // pred_region
          %s166 = ssub.s32 2048, 2048
          %167 = vsyncadd [#allocation8], %s166
          %s168 = sshll.u32 [#allocation7], 4
          %s169 = int_to_ptr.vmem [resolvable:$true] %s168
          %174 = dma.hbm_to_vmem [thread:$0]  %s1, 2048, %s169, [#allocation8], 64, 64, 4
        $region16: #{tpu_custom_call.1} parent=11 // pred_fallthru
          _
        // Predicated region
        $region17: #{tpu_custom_call.1} parent=11 // pred_check
          %p175 = pneg %p84
        $region18: #{tpu_custom_call.1} parent=11 // pred_check_branch
          %177 = sbr.rel (%p175) target = $region20
        $region19: #{tpu_custom_call.1} parent=11 // pred_region
          _
        $region20: #{tpu_custom_call.1} parent=11 // pred_fallthru
          _
        // Predicated region
        $region21: #{tpu_custom_call.1} parent=11 // pred_check
          %p178 = pneg %p105
        $region22: #{tpu_custom_call.1} parent=11 // pred_check_branch
          %180 = sbr.rel (%p178) target = $region24
        $region23: #{tpu_custom_call.1} parent=11 // pred_region
          %s182 = ssub.s32 1024, 1024
          %183 = vsyncadd [#allocation8], %s182
          %s184 = sshll.u32 [#allocation9], 4
          %s185 = int_to_ptr.vmem [resolvable:$true] %s184
          %190 = dma.hbm_to_vmem [thread:$0]  %s3, 1024, %s185, [#allocation8], 64, 64, 4
        $region24: #{tpu_custom_call.1} parent=11 // pred_fallthru
          _
        // Predicated region
        $region25: #{tpu_custom_call.1} parent=11 // pred_check
          %p191 = pneg %p126
        $region26: #{tpu_custom_call.1} parent=11 // pred_check_branch
          %193 = sbr.rel (%p191) target = $region28
        $region27: #{tpu_custom_call.1} parent=11 // pred_region
          _
        $region28: #{tpu_custom_call.1} parent=11 // pred_fallthru
          _
      $region12: #{tpu_custom_call.1} parent=5 // pred_fallthru
        _
      %p194 = scmp.lt.s32.totalorder %s16, 3
      // Predicated region
      $region29: #{tpu_custom_call.1} parent=5 // pred_check
        %p195 = pneg %p194
      $region30: #{tpu_custom_call.1} parent=5 // pred_check_branch
        %197 = sbr.rel (%p195) target = $region32
      $region31: #{tpu_custom_call.1} parent=5 // pred_region
        // Predicated region
        $region33: #{tpu_custom_call.1} parent=31 // pred_check
          %p198 = pneg %p36
        $region34: #{tpu_custom_call.1} parent=31 // pred_check_branch
          %200 = sbr.rel (%p198) target = $region36
        $region35: #{tpu_custom_call.1} parent=31 // pred_region
          %s201 = sand.u32 %s26, 1
          %s202 = scalar_lea.sflag [#allocation5], %s201
          %s203 = sand.u32 %s26, 1
          %s204 = smul.addr %s203, 32
          %s205 = scalar_lea.vmem [#allocation4], %s204
          %s206 = smul.u32 2, %s16
          %s207 = ssub.s32 5, %s206
          %p208 = scmp.lt.s32.totalorder %s207, 2
          %s209 = scalar_select %p208, %s207, 2
          %s210 = smul.u32 128, %s209
          %s211 = smul.u32 %s210, 2
          %s213 = ssub.s32 512, %s211
          %214 = vsyncadd %s202, %s213
          %p215 = scmp.ne.s32.totalorder 0, %s211
          %s216 = smul.addr %s206, 2
          %s217 = smul.addr %s216, 128
          %s218 = scalar_lea.hbm %s0, %s217
          %s219 = smul.u32 16, %s209
          %s220 = sshll.u32 %s205, 4
          %s221 = int_to_ptr.vmem [resolvable:$true] %s220
          %s222 = sshll.u32 %s219, 4
          %226 = dma.hbm_to_vmem [thread:$0]  (%p215), %s218, %s222, %s221, %s202, 256, 256, 16
        $region36: #{tpu_custom_call.1} parent=31 // pred_fallthru
          _
      $region32: #{tpu_custom_call.1} parent=5 // pred_fallthru
        _
      %p227 = scmp.le.s32.totalorder 1, %s16
      %p228 = scmp.lt.s32.totalorder %s16, 4
      %p229 = pnand %p227, %p228
      %p230 = pneg %p229
      // Predicated region
      $region37: #{tpu_custom_call.1} parent=5 // pred_check
        _
      $region38: #{tpu_custom_call.1} parent=5 // pred_check_branch
        %232 = sbr.rel (%p229) target = $region40
      $region39: #{tpu_custom_call.1} parent=5 // pred_region
        %s233 = ssub.s32 %s16, 1
        %s234 = sand.u32 %s29, 1
        %s235 = scalar_lea.sflag [#allocation5], %s234
        %s236 = sand.u32 %s29, 1
        %s237 = smul.addr %s236, 32
        %s238 = scalar_lea.vmem [#allocation4], %s237
        // Predicated region
        $region41: #{tpu_custom_call.1} parent=39 // pred_check
          %p239 = pneg %p42
        $region42: #{tpu_custom_call.1} parent=39 // pred_check_branch
          %241 = sbr.rel (%p239) target = $region44
        $region43: #{tpu_custom_call.1} parent=39 // pred_region
          %242 = dma.done %s235, 512
        $region44: #{tpu_custom_call.1} parent=39 // pred_fallthru
          _
        // Predicated region
        $region45: #{tpu_custom_call.1} parent=39 // pred_check
          %p243 = pneg %p63
        $region46: #{tpu_custom_call.1} parent=39 // pred_check_branch
          %245 = sbr.rel (%p243) target = $region48
        $region47: #{tpu_custom_call.1} parent=39 // pred_region
          %246 = dma.done [#allocation8], 2048
        $region48: #{tpu_custom_call.1} parent=39 // pred_fallthru
          _
        // Predicated region
        $region49: #{tpu_custom_call.1} parent=39 // pred_check
          %p247 = pneg %p105
        $region50: #{tpu_custom_call.1} parent=39 // pred_check_branch
          %249 = sbr.rel (%p247) target = $region52
        $region51: #{tpu_custom_call.1} parent=39 // pred_region
          %250 = dma.done [#allocation8], 1024
        $region52: #{tpu_custom_call.1} parent=39 // pred_fallthru
          _
        %s251 = sand.u32 %s29, 1
        %s252 = scalar_lea.sflag [#allocation5], %s251
        %s253 = sand.u32 %s29, 1
        %s254 = smul.addr %s253, 32
        %s255 = scalar_lea.vmem [#allocation4], %s254
        %p256 = pneg %p42
        %p257 = pneg %p39
        %p258 = pneg %p63
        %p259 = pneg %p60
        %p260 = pneg %p84
        %p261 = pneg %p81
        %p262 = pneg %p105
        %p263 = pneg %p102
        %p264 = pneg %p126
        %p265 = pneg %p123
        %p266 = pneg %p147
        %p267 = pneg %p144
        %s268 = smul.u32 2, %s21
        %s269 = ssub.s32 5, %s268
        %p270 = scmp.lt.s32.totalorder %s269, 2
        %s271 = scalar_select %p270, %s269, 2
        %s272 = smul.u32 128, %s271
        %s273 = smul.u32 %s272, 2
        %p275 = scmp.eq.s32.totalorder %s21, 0
        // Predicated region
        $region53: #{tpu_custom_call.1} parent=39 // pred_check
          %p276 = pneg %p275
        $region54: #{tpu_custom_call.1} parent=39 // pred_check_branch
          %278 = sbr.rel (%p276) target = $region56
        $region55: #{tpu_custom_call.1} parent=39 // pred_region
          %279 = vst [vmem:[#allocation3] sm:$0x1] inf
          %280 = vst [vmem:[#allocation2] sm:$0x1] 0.0
        $region56: #{tpu_custom_call.1} parent=39 // pred_fallthru
          _
        %v281 = vld [vmem:[%s238] sm:$0xff]
        %v282 = vld [vmem:[%s238 + $0x8] sm:$0xff]
        %v283 = vld [vmem:[%s238 + $0x10] sm:$0xff]
        %v284 = vld [vmem:[%s238 + $0x18] sm:$0xff]
        %v285 = vpack.c.bf16 %v283, %v281
        %v286 = vpack.c.bf16 %v284, %v282
        %v287 = vld [vmem:[#allocation7] sm:$0xf]
        %v288 = vld [vmem:[#allocation7 + $0x4] sm:$0xf]
        %v289 = vld [vmem:[#allocation7 + $0x8] sm:$0xf]
        %v290 = vld [vmem:[#allocation7 + $0xc] sm:$0xf]
        %v291 = vld [vmem:[#allocation7 + $0x10] sm:$0xf]
        %v292 = vld [vmem:[#allocation7 + $0x14] sm:$0xf]
        %v293 = vld [vmem:[#allocation7 + $0x18] sm:$0xf]
        %v294 = vld [vmem:[#allocation7 + $0x1c] sm:$0xf]
        %v295 = vld [vmem:[#allocation7 + $0x20] sm:$0xf]
        %v296 = vld [vmem:[#allocation7 + $0x24] sm:$0xf]
        %v297 = vld [vmem:[#allocation7 + $0x28] sm:$0xf]
        %v298 = vld [vmem:[#allocation7 + $0x2c] sm:$0xf]
        %v299 = vld [vmem:[#allocation7 + $0x30] sm:$0xf]
        %v300 = vld [vmem:[#allocation7 + $0x34] sm:$0xf]
        %v301 = vld [vmem:[#allocation7 + $0x38] sm:$0xf]
        %v302 = vld [vmem:[#allocation7 + $0x3c] sm:$0xf]
        %v303 = vld [vmem:[#allocation7 + $0x40] sm:$0xf]
        %v304 = vld [vmem:[#allocation7 + $0x44] sm:$0xf]
        %v305 = vld [vmem:[#allocation7 + $0x48] sm:$0xf]
        %v306 = vld [vmem:[#allocation7 + $0x4c] sm:$0xf]
        %v307 = vld [vmem:[#allocation7 + $0x50] sm:$0xf]
        %v308 = vld [vmem:[#allocation7 + $0x54] sm:$0xf]
        %v309 = vld [vmem:[#allocation7 + $0x58] sm:$0xf]
        %v310 = vld [vmem:[#allocation7 + $0x5c] sm:$0xf]
        %v311 = vld [vmem:[#allocation7 + $0x60] sm:$0xf]
        %v312 = vld [vmem:[#allocation7 + $0x64] sm:$0xf]
        %v313 = vld [vmem:[#allocation7 + $0x68] sm:$0xf]
        %v314 = vld [vmem:[#allocation7 + $0x6c] sm:$0xf]
        %v315 = vld [vmem:[#allocation7 + $0x70] sm:$0xf]
        %v316 = vld [vmem:[#allocation7 + $0x74] sm:$0xf]
        %v317 = vld [vmem:[#allocation7 + $0x78] sm:$0xf]
        %v318 = vld [vmem:[#allocation7 + $0x7c] sm:$0xf]
        %v319 = vld [vmem:[%s2] sm:$0x1]
        %v321 = vlaneseq
        %v322 = vshrl.u32 %v321, 7
        %v323 = vsub.s32 0, %v322
        %v324 = vrot.slane %v319, %v323
        %v358 = vunpack.c.l.b16 %v287
        %v359 = vunpack.c.l.b16 %v288
        %v360 = vunpack.c.l.b16 %v289
        %v361 = vunpack.c.l.b16 %v290
        %v362 = vunpack.c.l.b16 %v291
        %v363 = vunpack.c.l.b16 %v292
        %v364 = vunpack.c.l.b16 %v293
        %v365 = vunpack.c.l.b16 %v294
        %v366 = vunpack.c.l.b16 %v295
        %v367 = vunpack.c.l.b16 %v296
        %v368 = vunpack.c.l.b16 %v297
        %v369 = vunpack.c.l.b16 %v298
        %v370 = vunpack.c.l.b16 %v299
        %v371 = vunpack.c.l.b16 %v300
        %v372 = vunpack.c.l.b16 %v301
        %v373 = vunpack.c.l.b16 %v302
        %v374 = vunpack.c.l.b16 %v303
        %v375 = vunpack.c.l.b16 %v304
        %v376 = vunpack.c.l.b16 %v305
        %v377 = vunpack.c.l.b16 %v306
        %v378 = vunpack.c.l.b16 %v307
        %v379 = vunpack.c.l.b16 %v308
        %v380 = vunpack.c.l.b16 %v309
        %v381 = vunpack.c.l.b16 %v310
        %v382 = vunpack.c.l.b16 %v311
        %v383 = vunpack.c.l.b16 %v312
        %v384 = vunpack.c.l.b16 %v313
        %v385 = vunpack.c.l.b16 %v314
        %v386 = vunpack.c.l.b16 %v315
        %v387 = vunpack.c.l.b16 %v316
        %v388 = vunpack.c.l.b16 %v317
        %v389 = vunpack.c.l.b16 %v318
        %v390 = vpack.c.b16 %v359, %v358
        %v391 = vpack.c.b16 %v361, %v360
        %v392 = vpack.c.b16 %v363, %v362
        %v393 = vpack.c.b16 %v365, %v364
        %v394 = vpack.c.b16 %v367, %v366
        %v395 = vpack.c.b16 %v369, %v368
        %v396 = vpack.c.b16 %v371, %v370
        %v397 = vpack.c.b16 %v373, %v372
        %v398 = vpack.c.b16 %v375, %v374
        %v399 = vpack.c.b16 %v377, %v376
        %v400 = vpack.c.b16 %v379, %v378
        %v401 = vpack.c.b16 %v381, %v380
        %v402 = vpack.c.b16 %v383, %v382
        %v403 = vpack.c.b16 %v385, %v384
        %v404 = vpack.c.b16 %v387, %v386
        %v405 = vpack.c.b16 %v389, %v388
        %422 = vmatprep.subr.bf16.mxu0 0
        %423 = vmatpush1.bf16.msra.mxu0 %v397
        %424 = vmatprep.subr.bf16.mxu0 0
        %425 = vmatpush1.bf16.msra.mxu0 %v396
        %426 = vmatprep.subr.bf16.mxu0 0
        %427 = vmatpush1.bf16.msra.mxu0 %v395
        %428 = vmatprep.subr.bf16.mxu0 0
        %429 = vmatpush1.bf16.msra.mxu0 %v394
        %430 = vmatprep.subr.bf16.mxu0 0
        %431 = vmatpush1.bf16.msra.mxu0 %v393
        %432 = vmatprep.subr.bf16.mxu0 0
        %433 = vmatpush1.bf16.msra.mxu0 %v392
        %434 = vmatprep.subr.bf16.mxu0 0
        %435 = vmatpush1.bf16.msra.mxu0 %v391
        %436 = vmatprep.subr.bf16.mxu0 0
        %437 = vmatpush1.bf16.msra.mxu0 %v390
        %438 = vmatprep.subr.bf16.mxu0 0
        %439 = vmatpush2.bf16.msra.mxu0 %v405
        %440 = vmatprep.subr.bf16.mxu0 0
        %441 = vmatpush2.bf16.msra.mxu0 %v404
        %442 = vmatprep.subr.bf16.mxu0 0
        %443 = vmatpush2.bf16.msra.mxu0 %v403
        %444 = vmatprep.subr.bf16.mxu0 0
        %445 = vmatpush2.bf16.msra.mxu0 %v402
        %446 = vmatprep.subr.bf16.mxu0 0
        %447 = vmatpush2.bf16.msra.mxu0 %v401
        %448 = vmatprep.subr.bf16.mxu0 0
        %449 = vmatpush2.bf16.msra.mxu0 %v400
        %450 = vmatprep.subr.bf16.mxu0 0
        %451 = vmatpush2.bf16.msra.mxu0 %v399
        %452 = vmatprep.subr.bf16.mxu0 0
        %453 = vmatpush2.bf16.msra.mxu0 %v398
        %454 = vmatprep.mubr.bf16.mxu0 %v286
        %455 = vmatmul.mubr.bf16.gmra.mxu0 %v285
        %v456 = vpop.f32.mrf.mxu0
        %v457 = vadd.f32 %v324, %v456
        %v458 = vpop.f32.mrf.mxu0
        %v459 = vpop.f32.mrf.mxu0
        %v460 = vadd.f32 %v324, %v459
        %v461 = vpop.f32.mrf.mxu0
        %462 = vdwg.mxu0
        %v463 = vmax.f32 %v457, 0.0
        %v464 = vmax.f32 %v460, 0.0
        %v465 = vpack.c.bf16 %v464, %v463
        %v466 = vld [vmem:[#allocation9] sm:$0xf]
        %v467 = vld [vmem:[#allocation9 + $0x4] sm:$0xf]
        %v468 = vld [vmem:[#allocation9 + $0x8] sm:$0xf]
        %v469 = vld [vmem:[#allocation9 + $0xc] sm:$0xf]
        %v470 = vld [vmem:[#allocation9 + $0x10] sm:$0xf]
        %v471 = vld [vmem:[#allocation9 + $0x14] sm:$0xf]
        %v472 = vld [vmem:[#allocation9 + $0x18] sm:$0xf]
        %v473 = vld [vmem:[#allocation9 + $0x1c] sm:$0xf]
        %v474 = vld [vmem:[#allocation9 + $0x20] sm:$0xf]
        %v475 = vld [vmem:[#allocation9 + $0x24] sm:$0xf]
        %v476 = vld [vmem:[#allocation9 + $0x28] sm:$0xf]
        %v477 = vld [vmem:[#allocation9 + $0x2c] sm:$0xf]
        %v478 = vld [vmem:[#allocation9 + $0x30] sm:$0xf]
        %v479 = vld [vmem:[#allocation9 + $0x34] sm:$0xf]
        %v480 = vld [vmem:[#allocation9 + $0x38] sm:$0xf]
        %v481 = vld [vmem:[#allocation9 + $0x3c] sm:$0xf]
        %v482 = vld [vmem:[%s4] sm:$0x1]
        %v484 = vlaneseq
        %v485 = vshrl.u32 %v484, 7
        %v486 = vsub.s32 0, %v485
        %v487 = vrot.slane %v482, %v486
        %v505 = vunpack.c.l.b16 %v466
        %v506 = vunpack.c.l.b16 %v467
        %v507 = vunpack.c.l.b16 %v468
        %v508 = vunpack.c.l.b16 %v469
        %v509 = vunpack.c.l.b16 %v470
        %v510 = vunpack.c.l.b16 %v471
        %v511 = vunpack.c.l.b16 %v472
        %v512 = vunpack.c.l.b16 %v473
        %v513 = vunpack.c.l.b16 %v474
        %v514 = vunpack.c.l.b16 %v475
        %v515 = vunpack.c.l.b16 %v476
        %v516 = vunpack.c.l.b16 %v477
        %v517 = vunpack.c.l.b16 %v478
        %v518 = vunpack.c.l.b16 %v479
        %v519 = vunpack.c.l.b16 %v480
        %v520 = vunpack.c.l.b16 %v481
        %v521 = vpack.c.b16 %v506, %v505
        %v522 = vpack.c.b16 %v508, %v507
        %v523 = vpack.c.b16 %v510, %v509
        %v524 = vpack.c.b16 %v512, %v511
        %v525 = vpack.c.b16 %v514, %v513
        %v526 = vpack.c.b16 %v516, %v515
        %v527 = vpack.c.b16 %v518, %v517
        %v528 = vpack.c.b16 %v520, %v519
        %537 = vmatprep.subr.bf16.mxu0 0
        %538 = vmatpush1.bf16.msra.mxu0 %v528
        %539 = vmatprep.subr.bf16.mxu0 0
        %540 = vmatpush1.bf16.msra.mxu0 %v527
        %541 = vmatprep.subr.bf16.mxu0 0
        %542 = vmatpush1.bf16.msra.mxu0 %v526
        %543 = vmatprep.subr.bf16.mxu0 0
        %544 = vmatpush1.bf16.msra.mxu0 %v525
        %545 = vmatprep.subr.bf16.mxu0 0
        %546 = vmatpush1.bf16.msra.mxu0 %v524
        %547 = vmatprep.subr.bf16.mxu0 0
        %548 = vmatpush1.bf16.msra.mxu0 %v523
        %549 = vmatprep.subr.bf16.mxu0 0
        %550 = vmatpush1.bf16.msra.mxu0 %v522
        %551 = vmatprep.subr.bf16.mxu0 0
        %552 = vmatpush1.bf16.msra.mxu0 %v521
        %553 = vmatprep.subr.bf16.mxu0 0
        %554 = vmatpush2.bf16.msra.mxu0 0
        %555 = vmatprep.subr.bf16.mxu0 0
        %556 = vmatpush2.bf16.msra.mxu0 0
        %557 = vmatprep.subr.bf16.mxu0 0
        %558 = vmatpush2.bf16.msra.mxu0 0
        %559 = vmatprep.subr.bf16.mxu0 0
        %560 = vmatpush2.bf16.msra.mxu0 0
        %561 = vmatprep.subr.bf16.mxu0 0
        %562 = vmatpush2.bf16.msra.mxu0 0
        %563 = vmatprep.subr.bf16.mxu0 0
        %564 = vmatpush2.bf16.msra.mxu0 0
        %565 = vmatprep.subr.bf16.mxu0 0
        %566 = vmatpush2.bf16.msra.mxu0 0
        %567 = vmatprep.subr.bf16.mxu0 0
        %568 = vmatpush2.bf16.msra.mxu0 0
        %569 = vmatprep.mubr.bf16.mxu0 0
        %570 = vmatmul.mubr.bf16.gmra.mxu0 %v465
        %v571 = vpop.f32.mrf.mxu0
        %v572 = vadd.f32 %v487, %v571
        %v573 = vpop.f32.mrf.mxu0
        %v574 = vpop.f32.mrf.mxu0
        %v575 = vadd.f32 %v487, %v574
        %v576 = vpop.f32.mrf.mxu0
        %577 = vdwg.mxu0
        %v578 = vlaneseq
        %v579 = vshrl.u32 %v578, 7
        %v580 = vadd.s32 %v579, 8
        %s581 = smul.u32 %s21, 16
        %v582 = vstv %s581
        %v583 = vadd.s32 %v582, %v579
        %v584 = vadd.s32 %v582, %v580
        %vm585 = vcmp.lt.s32.totalorder %v583, 37
        %vm586 = vcmp.lt.s32.totalorder %v584, 37
        %v587 = vsel %vm585, 1, 0
        %v588 = vsel %vm586, 1, 0
        %vm589 = vcmp.eq.s32.totalorder %v587, 1
        %vm590 = vcmp.eq.s32.totalorder %v588, 1
        %v591 = vsel %vm589, %v572, 0.0
        %v592 = vsel %vm590, %v575, 0.0
        %593 = vmax.xlane.f32.xlu0 %v591
        %v594 = vpop.xlane.xlu0 %593
        %595 = vmax.xlane.f32.xlu0 %v592
        %v596 = vpop.xlane.xlu0 %595
        %v597 = vsub.f32 %v591, %v594
        %v598 = vsub.f32 %v592, %v596
        %v599 = vmul.f32 %v597, 1.442695
        %v600 = vpow.pop %v599
        %v601 = vmul.f32 %v598, 1.442695
        %v602 = vpow.pop %v601
        %603 = vadd.xlane.f32.xlu0 %v600
        %v604 = vpop.xlane.xlu0 %603
        %605 = vadd.xlane.f32.xlu0 %v602
        %v606 = vpop.xlane.xlu0 %605
        %v607 = vsel %vm585, %v604, inf
        %v608 = vsel %vm586, %v606, inf
        %v609 = vmin.f32 %v607, %v608
        %v610 = vrot.slane %v609, 4
        %v611 = vmin.f32 %v609, %v610
        %v612 = vrot.slane %v611, 2
        %v613 = vmin.f32 %v611, %v612
        %v614 = vrot.slane %v613, 1
        %v615 = vmin.f32 %v613, %v614
        %s616 = vtos %v615
        %v617 = vstv %s616
        %vm618 = vcmp.eq.f32.partialorder %v607, %v617
        %vm619 = vcmp.eq.f32.partialorder %v608, %v617
        %v620 = vsel %vm618, %v579, 16
        %v621 = vsel %vm619, %v580, 16
        %vm622 = vcmp.lt.s32.totalorder %v620, %v621
        %v623 = vsel %vm622, %v620, %v621
        %v624 = vrot.slane %v623, 4
        %vm625 = vcmp.lt.s32.totalorder %v623, %v624
        %v626 = vsel %vm625, %v623, %v624
        %v627 = vrot.slane %v626, 2
        %vm628 = vcmp.lt.s32.totalorder %v626, %v627
        %v629 = vsel %vm628, %v626, %v627
        %v630 = vrot.slane %v629, 1
        %vm631 = vcmp.lt.s32.totalorder %v629, %v630
        %v632 = vsel %vm631, %v629, %v630
        %s633 = vtos %v632
        %v634 = vlaneseq
        %v635 = vand.u32 %v634, 127
        %v636 = vstv %s633
        %vm637 = vcmp.eq.s32.totalorder %v635, %v636
        %v638 = vsel %vm637, 1, 0
        %v639 = vcvt.s32.f32 %v638
        %vm640 = vcmask 130048
        %v642 = vsel %vm640, %v639, 0
        %644 = vmatprep.subr.mxu0 0.0
        %645 = vmatpush1.msra.mxu0 0.0
        %646 = vmatprep.subr.mxu0 0.0
        %647 = vmatpush1.msra.mxu0 0.0
        %648 = vmatprep.subr.mxu0 0.0
        %649 = vmatpush1.msra.mxu0 0.0
        %650 = vmatprep.subr.mxu0 0.0
        %651 = vmatpush1.msra.mxu0 0.0
        %652 = vmatprep.subr.mxu0 0.0
        %653 = vmatpush1.msra.mxu0 0.0
        %654 = vmatprep.subr.mxu0 0.0
        %655 = vmatpush1.msra.mxu0 0.0
        %656 = vmatprep.subr.mxu0 0.0
        %657 = vmatpush1.msra.mxu0 0.0
        %658 = vmatprep.subr.mxu0 0.0
        %659 = vmatpush1.msra.mxu0 0.0
        %660 = vmatprep.subr.mxu0 0.0
        %661 = vmatpush1.msra.mxu0 0.0
        %662 = vmatprep.subr.mxu0 0.0
        %663 = vmatpush1.msra.mxu0 0.0
        %664 = vmatprep.subr.mxu0 0.0
        %665 = vmatpush1.msra.mxu0 0.0
        %666 = vmatprep.subr.mxu0 0.0
        %667 = vmatpush1.msra.mxu0 0.0
        %668 = vmatprep.subr.mxu0 0.0
        %669 = vmatpush1.msra.mxu0 0.0
        %670 = vmatprep.subr.mxu0 0.0
        %671 = vmatpush1.msra.mxu0 0.0
        %672 = vmatprep.subr.mxu0 0.0
        %673 = vmatpush1.msra.mxu0 %v592
        %674 = vmatprep.subr.mxu0 0.0
        %675 = vmatpush1.msra.mxu0 %v591
        %676 = vmatprep.subr.mxu0 0.0
        %677 = vmatpush2.msra.mxu0 0.0
        %678 = vmatprep.subr.mxu0 0.0
        %679 = vmatpush2.msra.mxu0 0.0
        %680 = vmatprep.subr.mxu0 0.0
        %681 = vmatpush2.msra.mxu0 0.0
        %682 = vmatprep.subr.mxu0 0.0
        %683 = vmatpush2.msra.mxu0 0.0
        %684 = vmatprep.subr.mxu0 0.0
        %685 = vmatpush2.msra.mxu0 0.0
        %686 = vmatprep.subr.mxu0 0.0
        %687 = vmatpush2.msra.mxu0 0.0
        %688 = vmatprep.subr.mxu0 0.0
        %689 = vmatpush2.msra.mxu0 0.0
        %690 = vmatprep.subr.mxu0 0.0
        %691 = vmatpush2.msra.mxu0 0.0
        %692 = vmatprep.subr.mxu0 0.0
        %693 = vmatpush2.msra.mxu0 0.0
        %694 = vmatprep.subr.mxu0 0.0
        %695 = vmatpush2.msra.mxu0 0.0
        %696 = vmatprep.subr.mxu0 0.0
        %697 = vmatpush2.msra.mxu0 0.0
        %698 = vmatprep.subr.mxu0 0.0
        %699 = vmatpush2.msra.mxu0 0.0
        %700 = vmatprep.subr.mxu0 0.0
        %701 = vmatpush2.msra.mxu0 0.0
        %702 = vmatprep.subr.mxu0 0.0
        %703 = vmatpush2.msra.mxu0 0.0
        %704 = vmatprep.subr.mxu0 0.0
        %705 = vmatpush2.msra.mxu0 0.0
        %706 = vmatprep.subr.mxu0 0.0
        %707 = vmatpush2.msra.mxu0 0.0
        %708 = vmatprep.mubr.f32.mxu0 0.0
        %709 = vmatmul.mubr.f32.gmra.mxu0 %v642
        %v710 = vpop.f32.mrf.mxu0
        %v711 = vadd.f32 0.0, %v710
        %v712 = vpop.f32.mrf.mxu0
        %713 = vdwg.mxu0
        %v714 = vld [vmem:[#allocation3] sm:$0x1]
        %vm715 = vcmp.lt.f32.partialorder %v617, %v714
        %v716 = vsel %vm715, %v617, %v714
        %717 = vst [vmem:[#allocation3] sm:$0x1] %v716
        %v718 = vld [vmem:[#allocation2] sm:$0x1]
        %v719 = vsel %vm715, %v711, %v718
        %720 = vst [vmem:[#allocation2] sm:$0x1] %v719
        %p721 = scmp.eq.s32.totalorder %s21, 2
        // Predicated region
        $region57: #{tpu_custom_call.1} parent=39 // pred_check
          %p722 = pneg %p721
        $region58: #{tpu_custom_call.1} parent=39 // pred_check_branch
          %724 = sbr.rel (%p722) target = $region60
        $region59: #{tpu_custom_call.1} parent=39 // pred_region
          %v725 = vld [vmem:[#allocation2] sm:$0x1]
          %726 = vst [vmem:[#allocation10] sm:$0x1] %v725
        $region60: #{tpu_custom_call.1} parent=39 // pred_fallthru
          _
        // Predicated region
        $region61: #{tpu_custom_call.1} parent=39 // pred_check
          %p727 = pneg %p144
        $region62: #{tpu_custom_call.1} parent=39 // pred_check_branch
          %729 = sbr.rel (%p727) target = $region64
        $region63: #{tpu_custom_call.1} parent=39 // pred_region
          %s731 = ssub.s32 16, 16
          %732 = vsyncadd [#allocation6], %s731
          %s734 = sshll.u32 [#allocation10], 4
          %s735 = int_to_ptr.vmem [resolvable:$true] %s734
          %737 = dma.vmem_to_hbm [thread:$0]  %s735, 16, %s5, [#allocation6]
        $region64: #{tpu_custom_call.1} parent=39 // pred_fallthru
          _
        // Predicated region
        $region65: #{tpu_custom_call.1} parent=39 // pred_check
          %p738 = pneg %p144
        $region66: #{tpu_custom_call.1} parent=39 // pred_check_branch
          %740 = sbr.rel (%p738) target = $region68
        $region67: #{tpu_custom_call.1} parent=39 // pred_region
          %741 = dma.done [#allocation6], 16
        $region68: #{tpu_custom_call.1} parent=39 // pred_fallthru
          _
      $region40: #{tpu_custom_call.1} parent=5 // pred_fallthru
        _
      %p742 = scmp.le.s32.totalorder 2, %s16
      // Predicated region
      $region69: #{tpu_custom_call.1} parent=5 // pred_check
        %p743 = pneg %p742
      $region70: #{tpu_custom_call.1} parent=5 // pred_check_branch
        %745 = sbr.rel (%p743) target = $region72
      $region71: #{tpu_custom_call.1} parent=5 // pred_region
        %s746 = ssub.s32 %s16, 2
      $region72: #{tpu_custom_call.1} parent=5 // pred_fallthru
        _
    $region6: #{tpu_custom_call.1} parent=1 // loop_footer
      %s20 = sadd.s32 1, %s16
    $region7: #{tpu_custom_call.1} parent=1 // loop_footer_branch
      %15 = sbr.rel target = $region3
    $region8: #{tpu_custom_call.1} parent=1 // loop_exit
      _
    %747 = vsyncpa [#allocation5], 1
    %s748 = scalar_lea.sflag [#allocation5], 1
    %749 = vsyncpa %s748, 1
    %750 = vsyncpa [#allocation8], 1
    %751 = vsyncpa [#allocation6], 1
    %s752 = scalar_lea.sflag [#allocation6], 1
    %753 = vsyncpa %s752, 1

</llo_original>
